<compile_context>
chip_gen: v6e
topology: v6e:2x2x1
jax: 0.10.0
libtpu: 0.0.40
codegen_flags: <defaults>
</compile_context>

<pallas_src>
import functools

import jax
import jax.numpy as jnp
from jax import lax
from jax.experimental import pallas as pl
from jax.experimental.pallas import tpu as pltpu

BN_EPS = 1e-5

# Conservative working-set budget: leaves headroom on v7x (64 MiB/TC) while still
# allowing large tiles on v5e/v6e (128 MiB).
_VMEM_BUDGET = 40 << 20
_VMEM_LIMIT_CAP = 48 << 20


def _pick_tile(dim, candidates=(512, 256, 128)):
    """Largest 128-aligned tile that divides dim (falls back to dim for small D)."""
    for t in candidates:
        if dim % t == 0:
            return t
    return dim


def _pick_tn(D):
    """Largest 128-aligned N tile that still gives >= 2 parallel tiles (v7x has
    2 TensorCores; a single j tile would idle one of them)."""
    for t in (512, 256, 128):
        if D % t == 0 and D // t >= 2:
            return t
    return _pick_tile(D)


# --------------------------------------------------------------------------- #
# Fast path: whole x VMEM-resident, 1-D grid over N tiles (K axis collapsed).  #
# --------------------------------------------------------------------------- #
def _resident_kernel(x_ref, w_ref, g_ref, be_ref, o_ref, *, matmul_dtype):
    j = pl.program_id(0)
    bsz, tn = o_ref.shape

    # x (B, D) is resident in VMEM (constant index_map => single DMA). Cast the
    # MXU LHS; keep the resident copy in native dtype for the gate.
    x_lhs = x_ref[...].astype(matmul_dtype)

    # x @ W^T for this N strip. W keeps its torch (out, in) layout; contraction
    # runs over dim 1 of both operands, so no wrapper-side transpose is needed.
    x1 = lax.dot_general(
        x_lhs, w_ref[...],
        dimension_numbers=(((1,), (1,)), ((), ())),
        preferred_element_type=jnp.float32)                      # (B, tn) f32

    # BatchNorm1d training-mode (biased) stats, two-pass (centered) variance.
    inv_b = jnp.float32(1.0 / bsz)
    mean = jnp.sum(x1, axis=0, keepdims=True) * inv_b            # (1, tn)
    xc = x1 - mean
    var = jnp.sum(xc * xc, axis=0, keepdims=True) * inv_b

    # gamma/beta/mean folded; Linear bias is canceled by the mean subtraction.
    scale = g_ref[...].astype(jnp.float32) * lax.rsqrt(var + BN_EPS)
    x1n = xc * scale + be_ref[...].astype(jnp.float32)
    gate = jax.nn.sigmoid(x1n)                                   # EUP

    # Gate operand = slice of the resident x block (no second x stream from HBM).
    start = pl.multiple_of(j * tn, tn)
    x_gate = x_ref[:, pl.ds(start, tn)].astype(jnp.float32)
    o_ref[...] = (x_gate * gate).astype(o_ref.dtype)


def _context_gating_resident(x, w_in, g2, be2, *, tn, est, matmul_dtype):
    B, D = x.shape
    grid = (D // tn,)
    vmem_limit = int(min(max(est + (4 << 20), 16 << 20), _VMEM_LIMIT_CAP))

    grid_spec = pltpu.PrefetchScalarGridSpec(
        num_scalar_prefetch=0,
        grid=grid,
        in_specs=[
            pl.BlockSpec((B, D), lambda j: (0, 0)),     # x, whole batch, resident
            pl.BlockSpec((tn, D), lambda j: (j, 0)),    # W (out, in) N strip
            pl.BlockSpec((1, tn), lambda j: (0, j)),    # gamma
            pl.BlockSpec((1, tn), lambda j: (0, j)),    # beta
        ],
        out_specs=pl.BlockSpec((B, tn), lambda j: (0, j)),
    )
    return pl.pallas_call(
        functools.partial(_resident_kernel, matmul_dtype=matmul_dtype),
        out_shape=jax.ShapeDtypeStruct((B, D), x.dtype),
        grid_spec=grid_spec,
        compiler_params=pltpu.CompilerParams(
            dimension_semantics=("parallel",),
            vmem_limit_bytes=vmem_limit,
        ),
    )(x, w_in, g2, be2)


# --------------------------------------------------------------------------- #
# Fallback path: (N, K) grid with an f32 accumulator (large B*D).              #
# --------------------------------------------------------------------------- #
def _tiled_kernel(x_ref, w_ref, g_ref, be_ref, o_ref, acc_ref, gate_ref, *,
                  matmul_dtype):
    j = pl.program_id(0)
    k = pl.program_id(1)
    nk = pl.num_programs(1)

    @pl.when(k == 0)
    def _():
        acc_ref[...] = jnp.zeros_like(acc_ref)

    # tn == tk, so the k == j LHS block is exactly the gate operand
    # x[:, j*tn:(j+1)*tn]: stash it instead of streaming x from HBM twice.
    @pl.when(k == j)
    def _():
        gate_ref[...] = x_ref[...]

    partial = lax.dot_general(
        x_ref[...].astype(matmul_dtype), w_ref[...],
        dimension_numbers=(((1,), (1,)), ((), ())),
        preferred_element_type=jnp.float32)                      # (B, tn) f32

    @pl.when(k < nk - 1)
    def _():
        acc_ref[...] += partial

    @pl.when(k == nk - 1)
    def _():
        # Fold the last partial product directly (skips one acc RMW + reload).
        x1 = acc_ref[...] + partial
        bsz = x1.shape[0]
        inv_b = jnp.float32(1.0 / bsz)
        mean = jnp.sum(x1, axis=0, keepdims=True) * inv_b
        xc = x1 - mean
        var = jnp.sum(xc * xc, axis=0, keepdims=True) * inv_b
        scale = g_ref[...].astype(jnp.float32) * lax.rsqrt(var + BN_EPS)
        x1n = xc * scale + be_ref[...].astype(jnp.float32)
        gate = jax.nn.sigmoid(x1n)
        o_ref[...] = (gate_ref[...].astype(jnp.float32) * gate).astype(o_ref.dtype)


def _context_gating_tiled(x, w_in, g2, be2, *, tile, est, matmul_dtype):
    B, D = x.shape
    tn = tk = tile
    grid = (D // tn, D // tk)   # (N tiles [parallel], K tiles [arbitrary, last])
    vmem_limit = int(min(max(est + (4 << 20), 16 << 20), _VMEM_LIMIT_CAP))

    grid_spec = pltpu.PrefetchScalarGridSpec(
        num_scalar_prefetch=0,
        grid=grid,
        in_specs=[
            pl.BlockSpec((B, tk), lambda j, k: (0, k)),    # x K slice (matmul LHS)
            pl.BlockSpec((tn, tk), lambda j, k: (j, k)),   # W (out, in) tile
            pl.BlockSpec((1, tn), lambda j, k: (0, j)),    # gamma
            pl.BlockSpec((1, tn), lambda j, k: (0, j)),    # beta
        ],
        out_specs=pl.BlockSpec((B, tn), lambda j, k: (0, j)),
        scratch_shapes=[
            pltpu.VMEM((B, tn), jnp.float32),   # f32 accumulator
            pltpu.VMEM((B, tn), x.dtype),       # stashed gate operand (k == j block)
        ],
    )
    return pl.pallas_call(
        functools.partial(_tiled_kernel, matmul_dtype=matmul_dtype),
        out_shape=jax.ShapeDtypeStruct((B, D), x.dtype),
        grid_spec=grid_spec,
        compiler_params=pltpu.CompilerParams(
            dimension_semantics=("parallel", "arbitrary"),
            vmem_limit_bytes=vmem_limit,
        ),
    )(x, w_in, g2, be2)


# --------------------------------------------------------------------------- #
# Public wrapper.                                                              #
# --------------------------------------------------------------------------- #
def context_gating(x, w, b, gamma, beta, *, matmul_dtype=jnp.bfloat16,
                   force_tiled=False):
    """ContextGating forward: x * sigmoid(BatchNorm1d(Linear(x))).

    x: (B, D); w: (D, D) torch-Linear layout (out_features, in_features);
    b, gamma, beta: (D,).

    * With BatchNorm enabled the fc bias `b` has no numerical effect (BN subtracts
      the batch mean, which contains the bias), so it is never added.
    * matmul_dtype: MXU operand dtype. Default bf16 halves W HBM traffic and
      unlocks the bf16 MXU rate; accumulation and the epilogue stay f32.
      Pass None to keep the native weight dtype (bit-tight vs the f32 reference).
    """
    del b  # canceled by BatchNorm's mean subtraction
    B, D = x.shape

    if matmul_dtype is None:
        matmul_dtype = w.dtype
    w_in = w if w.dtype == matmul_dtype else w.astype(matmul_dtype)
    g2 = gamma.reshape(1, D)
    be2 = beta.reshape(1, D)

    x_isz = jnp.dtype(x.dtype).itemsize
    w_isz = jnp.dtype(matmul_dtype).itemsize
    out_isz = x_isz

    tn0 = _pick_tn(D)
    tn_candidates = [t for t in dict.fromkeys((tn0, 256, 128)) if D % t == 0]
    if not tn_candidates:
        tn_candidates = [tn0]

    # --- Case A: whole (B, D) x VMEM-resident, 1-D grid over N tiles. -------- #
    def est_resident(t):
        return (2 * B * D * x_isz            # resident x (budget double-buffering)
                + 2 * t * D * w_isz          # W N-strip (double-buffered)
                + 2 * 2 * t * 4              # gamma + beta
                + 2 * B * t * out_isz        # output tile
                + B * D * w_isz              # in-kernel bf16 LHS cast (vreg/spill)
                + B * t * 4)                 # f32 x1 slice

    if not force_tiled:
        for t in tn_candidates:
            est = est_resident(t)
            if est <= _VMEM_BUDGET:
                return _context_gating_resident(
                    x, w_in, g2, be2, tn=t, est=est, matmul_dtype=matmul_dtype)

    # --- Case B: (N, K)-tiled accumulation for large B*D. -------------------- #
    # NOTE: if exposed W DMA shows up in a profile, add
    #       pipeline_mode=pl.Buffered(3) on the W BlockSpec only.
    def est_tiled(t):
        return (2 * (B * t * x_isz + t * t * w_isz + 2 * t * 4 + B * t * out_isz)
                + B * t * 4                  # f32 accumulator
                + B * t * x_isz              # gate stash
                + B * t * w_isz)             # in-kernel LHS cast

    tile = None
    for t in tn_candidates:
        if est_tiled(t) <= _VMEM_BUDGET:
            tile = t
            break
    if tile is None:
        # TODO(synk): batch-tiled variant with a hierarchical BN reduction
        # (per-tile sum/sumsq + finalize pass) for very large B; for now fall
        # back to the smallest aligned tile and rely on the VMEM limit.
        tile = tn_candidates[-1]
    return _context_gating_tiled(
        x, w_in, g2, be2, tile=tile, est=est_tiled(tile), matmul_dtype=matmul_dtype)


# --------------------------------------------------------------------------- #
# Reference + self-test.                                                       #
# --------------------------------------------------------------------------- #
def context_gating_ref(x, w, b, gamma, beta):
    """Pure-JAX reference matching the PyTorch forward (bias included)."""
    x1 = x @ w.T + b
    mean = jnp.mean(x1, axis=0, keepdims=True)
    var = jnp.mean((x1 - mean) ** 2, axis=0, keepdims=True)
    x1 = (x1 - mean) / jnp.sqrt(var + BN_EPS) * gamma + beta
    return x * jax.nn.sigmoid(x1)


def _make_inputs(key, B, D):
    kx, kw, kb, kg, kbe = jax.random.split(key, 5)
    x = jax.random.normal(kx, (B, D), dtype=jnp.float32)
    bound = 1.0 / (D ** 0.5)
    w = jax.random.uniform(kw, (D, D), minval=-bound, maxval=bound, dtype=jnp.float32)
    b = jax.random.uniform(kb, (D,), minval=-bound, maxval=bound, dtype=jnp.float32)
    gamma = jnp.ones((D,), jnp.float32) + 0.1 * jax.random.normal(kg, (D,), dtype=jnp.float32)
    beta = 0.1 * jax.random.normal(kbe, (D,), dtype=jnp.float32)
    return x, w, b, gamma, beta


if __name__ == "__main__":
    key = jax.random.PRNGKey(0)
    k1, k2 = jax.random.split(key)

    # Small shape consistent with the module: D = feature dim, single N tile.
    x, w, b, gamma, beta = _make_inputs(k1, B=8, D=128)
    ref = context_gating_ref(x, w, b, gamma, beta)

    # Exact (native-dtype MXU) path: tight tolerance vs the f32 reference.
    out_f32 = jax.block_until_ready(
        context_gating(x, w, b, gamma, beta, matmul_dtype=None))
    assert out_f32.shape == (8, 128)
    assert jnp.allclose(out_f32, ref, atol=1e-4, rtol=1e-4)

    # Default bf16-MXU path (halves W HBM traffic): looser tolerance.
    out_bf16 = jax.block_until_ready(context_gating(x, w, b, gamma, beta))
    assert jnp.allclose(out_bf16, ref, atol=3e-2, rtol=3e-2)

    # Larger D: exercises the resident fast path with a 2-tile parallel grid.
    x2, w2, b2, g2, be2 = _make_inputs(k2, B=16, D=512)
    ref2 = context_gating_ref(x2, w2, b2, g2, be2)
    out2 = jax.block_until_ready(
        context_gating(x2, w2, b2, g2, be2, matmul_dtype=None))
    assert out2.shape == (16, 512)
    assert jnp.allclose(out2, ref2, atol=1e-4, rtol=1e-4)

    # Force the (N, K)-tiled fallback (accumulator + gate stash) at small shape.
    out3 = jax.block_until_ready(
        context_gating(x2, w2, b2, g2, be2, matmul_dtype=None, force_tiled=True))
    assert jnp.allclose(out3, ref2, atol=1e-4, rtol=1e-4)

    print("KERNEL_OK")
</pallas_src>

<mosaic_0001>
module attributes {stable_mosaic.version = 11 : i64} {
  func.func @_resident_kernel(%arg0: i32, %arg1: memref<8x128xf32, #tpu.memory_space<vmem>>, %arg2: memref<128x128xf32, #tpu.memory_space<vmem>>, %arg3: memref<1x128xf32, #tpu.memory_space<vmem>>, %arg4: memref<1x128xf32, #tpu.memory_space<vmem>>, %arg5: memref<8x128xf32, #tpu.memory_space<vmem>>) attributes {dimension_semantics = [#tpu.dimension_semantics<parallel>], iteration_bounds = array<i64: 1>, scalar_prefetch = 0 : i64, scratch_operands = 0 : i64, tpu.core_type = #tpu.core_type<tc>, window_params = [{pipeline_mode = #tpu.pipeline_mode<synchronous>, transform_indices = @transform_0, window_bounds = array<i64: 8, 128>}, {transform_indices = @transform_1, window_bounds = array<i64: 128, 128>}, {transform_indices = @transform_2, window_bounds = array<i64: 1, 128>}, {transform_indices = @transform_3, window_bounds = array<i64: 1, 128>}, {transform_indices = @transform_4, window_bounds = array<i64: 8, 128>}]} {
    %c0 = arith.constant 0 : index
    %c0_0 = arith.constant 0 : index
    %0 = vector.load %arg1[%c0, %c0_0] : memref<8x128xf32, #tpu.memory_space<vmem>>, vector<8x128xf32>
    %c0_1 = arith.constant 0 : index
    %c0_2 = arith.constant 0 : index
    %1 = vector.load %arg2[%c0_1, %c0_2] : memref<128x128xf32, #tpu.memory_space<vmem>>, vector<128x128xf32>
    %cst = arith.constant dense<0.000000e+00> : vector<8x128xf32>
    %2 = tpu.matmul %0, %1, %cst {dimension_numbers = #tpu.dot_dimension_numbers<[1], [1], [0], [0], [0, 0, 1, 0], [], []>} : vector<8x128xf32>, vector<128x128xf32>, vector<8x128xf32> -> vector<8x128xf32>
    %cst_3 = arith.constant dense<0.000000e+00> : vector<128xf32>
    %3 = vector.multi_reduction <add>, %2, %cst_3 [0] : vector<8x128xf32> to vector<128xf32>
    %4 = vector.shape_cast %3 : vector<128xf32> to vector<1x128xf32>
    %cst_4 = arith.constant 1.250000e-01 : f32
    %5 = vector.broadcast %cst_4 : f32 to vector<1x128xf32>
    %6 = arith.mulf %4, %5 : vector<1x128xf32>
    %7 = vector.broadcast %6 : vector<1x128xf32> to vector<8x128xf32>
    %8 = arith.subf %2, %7 : vector<8x128xf32>
    %9 = arith.mulf %8, %8 : vector<8x128xf32>
    %cst_5 = arith.constant dense<0.000000e+00> : vector<128xf32>
    %10 = vector.multi_reduction <add>, %9, %cst_5 [0] : vector<8x128xf32> to vector<128xf32>
    %11 = vector.shape_cast %10 : vector<128xf32> to vector<1x128xf32>
    %cst_6 = arith.constant 1.250000e-01 : f32
    %12 = vector.broadcast %cst_6 : f32 to vector<1x128xf32>
    %13 = arith.mulf %11, %12 : vector<1x128xf32>
    %c0_7 = arith.constant 0 : index
    %c0_8 = arith.constant 0 : index
    %14 = vector.load %arg3[%c0_7, %c0_8] : memref<1x128xf32, #tpu.memory_space<vmem>>, vector<1x128xf32>
    %cst_9 = arith.constant 9.99999974E-6 : f32
    %15 = vector.broadcast %cst_9 : f32 to vector<1x128xf32>
    %16 = arith.addf %13, %15 : vector<1x128xf32>
    %17 = math.rsqrt %16 : vector<1x128xf32>
    %18 = arith.mulf %14, %17 : vector<1x128xf32>
    %19 = vector.broadcast %18 : vector<1x128xf32> to vector<8x128xf32>
    %20 = arith.mulf %8, %19 : vector<8x128xf32>
    %c0_10 = arith.constant 0 : index
    %c0_11 = arith.constant 0 : index
    %21 = vector.load %arg4[%c0_10, %c0_11] : memref<1x128xf32, #tpu.memory_space<vmem>>, vector<1x128xf32>
    %22 = vector.broadcast %21 : vector<1x128xf32> to vector<8x128xf32>
    %23 = arith.addf %20, %22 : vector<8x128xf32>
    %24 = arith.negf %23 : vector<8x128xf32>
    %25 = math.exp %24 : vector<8x128xf32>
    %cst_12 = arith.constant 1.000000e+00 : f32
    %26 = vector.broadcast %cst_12 : f32 to vector<8x128xf32>
    %27 = arith.addf %26, %25 : vector<8x128xf32>
    %28 = arith.divf %26, %27 : vector<8x128xf32>
    %c128_i32 = arith.constant 128 : i32
    %29 = arith.muli %arg0, %c128_i32 : i32
    %30 = tpu.assume_multiple %29, 128 : i32
    %c0_13 = arith.constant 0 : index
    %31 = arith.index_cast %30 : i32 to index
    %32 = vector.load %arg1[%c0_13, %31] : memref<8x128xf32, #tpu.memory_space<vmem>>, vector<8x128xf32>
    %33 = arith.mulf %32, %28 : vector<8x128xf32>
    %c0_14 = arith.constant 0 : index
    %c0_15 = arith.constant 0 : index
    %34 = vector.load %arg5[%c0_14, %c0_15] : memref<8x128xf32, #tpu.memory_space<vmem>>, vector<8x128xf32>
    tpu.vector_store %arg5[%c0_14, %c0_15], %33 {strides = array<i32>} : memref<8x128xf32, #tpu.memory_space<vmem>>, vector<8x128xf32>,
    return
  }
  func.func @transform_0(%arg0: i32) -> (i32, i32) {
    %c0_i32 = arith.constant 0 : i32
    %c0_i32_0 = arith.constant 0 : i32
    %c0_i32_1 = arith.constant 0 : i32
    return %c0_i32, %c0_i32_0 : i32, i32
  }
  func.func @transform_1(%arg0: i32) -> (i32, i32) {
    %c0_i32 = arith.constant 0 : i32
    %c0_i32_0 = arith.constant 0 : i32
    return %arg0, %c0_i32 : i32, i32
  }
  func.func @transform_2(%arg0: i32) -> (i32, i32) {
    %c0_i32 = arith.constant 0 : i32
    %c0_i32_0 = arith.constant 0 : i32
    return %c0_i32, %arg0 : i32, i32
  }
  func.func @transform_3(%arg0: i32) -> (i32, i32) {
    %c0_i32 = arith.constant 0 : i32
    %c0_i32_0 = arith.constant 0 : i32
    return %c0_i32, %arg0 : i32, i32
  }
  func.func @transform_4(%arg0: i32) -> (i32, i32) {
    %c0_i32 = arith.constant 0 : i32
    %c0_i32_0 = arith.constant 0 : i32
    return %c0_i32, %arg0 : i32, i32
  }
}

</mosaic_0001>

<llo_original>
// kernel: tpu_custom_call.1
$region0: #{tpu_custom_call.1}
  #allocation0 [shape = 'u32[]', space=smem, size = 0x4, offset = 0x4, fixed_abs, tag = 'smem constant byte address 0x4 - core index']
  #allocation1 [shape = 'u32[144,128]{1,0:T(1,128)}', space=vmem, size = 0x12000, scoped, tag = 'internal scratch']
  %s0 = inlined_call_operand.hbm [shape: f32[8,128], index: 0, kind: input, shape index: {}]
  %s1 = inlined_call_operand.hbm [shape: f32[128,128], index: 1, kind: input, shape index: {}]
  %s2 = inlined_call_operand.vmem [shape: f32[1,128], index: 2, kind: input, shape index: {}]
  %s3 = inlined_call_operand.vmem [shape: f32[1,128], index: 3, kind: input, shape index: {}]
  %s4 = inlined_call_operand.hbm [shape: f32[8,128], index: 4, kind: output, shape index: {}]
  %s5 = sld [smem:[#allocation0]]
  $region34: #{tpu_custom_call.1} parent=0
    _
  %s7 = ssub.s32 1, %s5
  %s8 = scalar_select 0, %s7, %s5
  $region1: #{tpu_custom_call.1} parent=0
    #allocation2 [shape = 'u8[4096]{0}', space=vmem, size = 0x1000, scoped, tag = 'input window, operand 0, single buffered']
    #allocation3 [shape = 's32[1]{0}', space=sflag, size = 0x4, scoped, tag = 'scoped memory for tpu_custom_call.1']
    #allocation4 [shape = 's32[1]{0}', space=sflag, size = 0x4, scoped, tag = 'scoped memory for tpu_custom_call.1']
    #allocation5 [shape = 'u8[65536]{0}', space=vmem, size = 0x10000, scoped, tag = 'input window, operand 1, single buffered']
    #allocation6 [shape = 's32[1]{0}', space=sflag, size = 0x4, scoped, tag = 'scoped memory for tpu_custom_call.1']
    #allocation7 [shape = 'u8[4096]{0}', space=vmem, size = 0x1000, scoped, tag = 'output window, operand 0, single buffered']
    %9 = vsyncpa [#allocation3], 0
    %10 = vsyncpa [#allocation6], 0
    %11 = vsyncpa [#allocation4], 0
    // Predicated region
    $region2: #{tpu_custom_call.1} parent=1 // pred_check
      _
    $region3: #{tpu_custom_call.1} parent=1 // pred_check_branch
      %13 = sbr.rel (0) target = $region5
    $region4: #{tpu_custom_call.1} parent=1 // pred_region
      %s15 = ssub.s32 128, 128
      %16 = vsyncadd [#allocation3], %s15
      %s18 = sshll.u32 [#allocation2], 4
      %s19 = int_to_ptr.vmem [resolvable:$true] %s18
      %21 = dma.hbm_to_vmem [thread:$0]  %s0, 128, %s19, [#allocation3]
    $region5: #{tpu_custom_call.1} parent=1 // pred_fallthru
      _
    // Predicated region
    $region6: #{tpu_custom_call.1} parent=1 // pred_check
      _
    $region7: #{tpu_custom_call.1} parent=1 // pred_check_branch
      %23 = sbr.rel (0) target = $region9
    $region8: #{tpu_custom_call.1} parent=1 // pred_region
      %s25 = ssub.s32 2048, 2048
      %26 = vsyncadd [#allocation6], %s25
      %s27 = sshll.u32 [#allocation5], 4
      %s28 = int_to_ptr.vmem [resolvable:$true] %s27
      %33 = dma.hbm_to_vmem [thread:$0]  %s1, 2048, %s28, [#allocation6], 128, 128, 8
    $region9: #{tpu_custom_call.1} parent=1 // pred_fallthru
      _
    // Predicated region
    $region10: #{tpu_custom_call.1} parent=1 // pred_check
      _
    $region11: #{tpu_custom_call.1} parent=1 // pred_check_branch
      %35 = sbr.rel (0) target = $region13
    $region12: #{tpu_custom_call.1} parent=1 // pred_region
      _
    $region13: #{tpu_custom_call.1} parent=1 // pred_fallthru
      _
    // Predicated region
    $region14: #{tpu_custom_call.1} parent=1 // pred_check
      _
    $region15: #{tpu_custom_call.1} parent=1 // pred_check_branch
      %37 = sbr.rel (0) target = $region17
    $region16: #{tpu_custom_call.1} parent=1 // pred_region
      _
    $region17: #{tpu_custom_call.1} parent=1 // pred_fallthru
      _
    // Predicated region
    $region18: #{tpu_custom_call.1} parent=1 // pred_check
      _
    $region19: #{tpu_custom_call.1} parent=1 // pred_check_branch
      %39 = sbr.rel (0) target = $region21
    $region20: #{tpu_custom_call.1} parent=1 // pred_region
      %40 = dma.done [#allocation3], 128
    $region21: #{tpu_custom_call.1} parent=1 // pred_fallthru
      _
    // Predicated region
    $region22: #{tpu_custom_call.1} parent=1 // pred_check
      _
    $region23: #{tpu_custom_call.1} parent=1 // pred_check_branch
      %42 = sbr.rel (0) target = $region25
    $region24: #{tpu_custom_call.1} parent=1 // pred_region
      %43 = dma.done [#allocation6], 2048
    $region25: #{tpu_custom_call.1} parent=1 // pred_fallthru
      _
    %v44 = vld [vmem:[#allocation2] sm:$0xff]
    %v45 = vld [vmem:[#allocation5] sm:$0xff]
    %v46 = vld [vmem:[#allocation5 + $0x8] sm:$0xff]
    %v47 = vld [vmem:[#allocation5 + $0x10] sm:$0xff]
    %v48 = vld [vmem:[#allocation5 + $0x18] sm:$0xff]
    %v49 = vld [vmem:[#allocation5 + $0x20] sm:$0xff]
    %v50 = vld [vmem:[#allocation5 + $0x28] sm:$0xff]
    %v51 = vld [vmem:[#allocation5 + $0x30] sm:$0xff]
    %v52 = vld [vmem:[#allocation5 + $0x38] sm:$0xff]
    %v53 = vld [vmem:[#allocation5 + $0x40] sm:$0xff]
    %v54 = vld [vmem:[#allocation5 + $0x48] sm:$0xff]
    %v55 = vld [vmem:[#allocation5 + $0x50] sm:$0xff]
    %v56 = vld [vmem:[#allocation5 + $0x58] sm:$0xff]
    %v57 = vld [vmem:[#allocation5 + $0x60] sm:$0xff]
    %v58 = vld [vmem:[#allocation5 + $0x68] sm:$0xff]
    %v59 = vld [vmem:[#allocation5 + $0x70] sm:$0xff]
    %v60 = vld [vmem:[#allocation5 + $0x78] sm:$0xff]
    %61 = vmatprep.subr.mxu0 0.0
    %62 = vmatpush1.xpose.msra.mxu0 %v60
    %63 = vmatprep.subr.mxu0 0.0
    %64 = vmatpush1.xpose.msra.mxu0 %v59
    %65 = vmatprep.subr.mxu0 0.0
    %66 = vmatpush1.xpose.msra.mxu0 %v58
    %67 = vmatprep.subr.mxu0 0.0
    %68 = vmatpush1.xpose.msra.mxu0 %v57
    %69 = vmatprep.subr.mxu0 0.0
    %70 = vmatpush1.xpose.msra.mxu0 %v56
    %71 = vmatprep.subr.mxu0 0.0
    %72 = vmatpush1.xpose.msra.mxu0 %v55
    %73 = vmatprep.subr.mxu0 0.0
    %74 = vmatpush1.xpose.msra.mxu0 %v54
    %75 = vmatprep.subr.mxu0 0.0
    %76 = vmatpush1.xpose.msra.mxu0 %v53
    %77 = vmatprep.subr.mxu0 0.0
    %78 = vmatpush1.xpose.msra.mxu0 %v52
    %79 = vmatprep.subr.mxu0 0.0
    %80 = vmatpush1.xpose.msra.mxu0 %v51
    %81 = vmatprep.subr.mxu0 0.0
    %82 = vmatpush1.xpose.msra.mxu0 %v50
    %83 = vmatprep.subr.mxu0 0.0
    %84 = vmatpush1.xpose.msra.mxu0 %v49
    %85 = vmatprep.subr.mxu0 0.0
    %86 = vmatpush1.xpose.msra.mxu0 %v48
    %87 = vmatprep.subr.mxu0 0.0
    %88 = vmatpush1.xpose.msra.mxu0 %v47
    %89 = vmatprep.subr.mxu0 0.0
    %90 = vmatpush1.xpose.msra.mxu0 %v46
    %91 = vmatprep.subr.mxu0 0.0
    %92 = vmatpush1.xpose.msra.mxu0 %v45
    %93 = vmatprep.subr.mxu0 0.0
    %94 = vmatpush2.xpose.msra.mxu0 0.0
    %95 = vmatprep.subr.mxu0 0.0
    %96 = vmatpush2.xpose.msra.mxu0 0.0
    %97 = vmatprep.subr.mxu0 0.0
    %98 = vmatpush2.xpose.msra.mxu0 0.0
    %99 = vmatprep.subr.mxu0 0.0
    %100 = vmatpush2.xpose.msra.mxu0 0.0
    %101 = vmatprep.subr.mxu0 0.0
    %102 = vmatpush2.xpose.msra.mxu0 0.0
    %103 = vmatprep.subr.mxu0 0.0
    %104 = vmatpush2.xpose.msra.mxu0 0.0
    %105 = vmatprep.subr.mxu0 0.0
    %106 = vmatpush2.xpose.msra.mxu0 0.0
    %107 = vmatprep.subr.mxu0 0.0
    %108 = vmatpush2.xpose.msra.mxu0 0.0
    %109 = vmatprep.subr.mxu0 0.0
    %110 = vmatpush2.xpose.msra.mxu0 0.0
    %111 = vmatprep.subr.mxu0 0.0
    %112 = vmatpush2.xpose.msra.mxu0 0.0
    %113 = vmatprep.subr.mxu0 0.0
    %114 = vmatpush2.xpose.msra.mxu0 0.0
    %115 = vmatprep.subr.mxu0 0.0
    %116 = vmatpush2.xpose.msra.mxu0 0.0
    %117 = vmatprep.subr.mxu0 0.0
    %118 = vmatpush2.xpose.msra.mxu0 0.0
    %119 = vmatprep.subr.mxu0 0.0
    %120 = vmatpush2.xpose.msra.mxu0 0.0
    %121 = vmatprep.subr.mxu0 0.0
    %122 = vmatpush2.xpose.msra.mxu0 0.0
    %123 = vmatprep.subr.mxu0 0.0
    %124 = vmatpush2.xpose.msra.mxu0 0.0
    %125 = vmatprep.mubr.f32.mxu0 0.0
    %126 = vmatmul.mubr.f32.gmra.mxu0 %v44
    %v127 = vpop.f32.mrf.mxu0
    %v128 = vadd.f32 0.0, %v127
    %v129 = vpop.f32.mrf.mxu0
    %130 = vdwg.mxu0
    %v131 = vrot.slane %v128, 4
    %v132 = vadd.f32 %v128, %v131
    %v133 = vrot.slane %v132, 2
    %v134 = vadd.f32 %v132, %v133
    %v135 = vrot.slane %v134, 1
    %v136 = vadd.f32 %v134, %v135
    %v137 = vmul.f32 %v136, 0.125
    %v138 = vsub.f32 %v128, %v137
    %v139 = vmul.f32 %v138, %v138
    %v140 = vrot.slane %v139, 4
    %v141 = vadd.f32 %v139, %v140
    %v142 = vrot.slane %v141, 2
    %v143 = vadd.f32 %v141, %v142
    %v144 = vrot.slane %v143, 1
    %v145 = vadd.f32 %v143, %v144
    %v146 = vmul.f32 %v145, 0.125
    %v147 = vld [vmem:[%s2] sm:$0x1]
    %v148 = vadd.f32 %v146, 1e-05
    %v149 = vrsqrt.pop %v148
    %v150 = vmul.f32 %v147, %v149
    %v152 = vlaneseq
    %v153 = vshrl.u32 %v152, 7
    %v154 = vsub.s32 0, %v153
    %v155 = vrot.slane %v150, %v154
    %v157 = vmul.f32 %v138, %v155
    %v158 = vld [vmem:[%s3] sm:$0x1]
    %v160 = vlaneseq
    %v161 = vshrl.u32 %v160, 7
    %v162 = vsub.s32 0, %v161
    %v163 = vrot.slane %v158, %v162
    %v165 = vadd.f32 %v157, %v163
    %v166 = vxor.u32 %v165, 2147483648
    %v167 = vmul.f32 %v166, 1.442695
    %v168 = vpow.pop %v167
    %v169 = vadd.f32 %v168, 1.0
    %v170 = vrcp.pop %v169
    %v171 = vmul.f32 1.0, %v170
    %s172 = smul.u32 0, 128
    %s173 = sshra.s32 %s172, 7
    %s174 = sand.u32 %s172, 127
    %s175 = scalar_lea.vmem [#allocation2], %s173
    %v176 = vld [vmem:[%s175] sm:$0xff]
    %v177 = vmul.f32 %v176, %v171
    %178 = vst [vmem:[#allocation7] sm:$0xff] %v177
    // Predicated region
    $region26: #{tpu_custom_call.1} parent=1 // pred_check
      _
    $region27: #{tpu_custom_call.1} parent=1 // pred_check_branch
      %180 = sbr.rel (0) target = $region29
    $region28: #{tpu_custom_call.1} parent=1 // pred_region
      %s182 = ssub.s32 128, 128
      %183 = vsyncadd [#allocation4], %s182
      %s185 = sshll.u32 [#allocation7], 4
      %s186 = int_to_ptr.vmem [resolvable:$true] %s185
      %188 = dma.vmem_to_hbm [thread:$0]  %s186, 128, %s4, [#allocation4]
    $region29: #{tpu_custom_call.1} parent=1 // pred_fallthru
      _
    // Predicated region
    $region30: #{tpu_custom_call.1} parent=1 // pred_check
      _
    $region31: #{tpu_custom_call.1} parent=1 // pred_check_branch
      %190 = sbr.rel (0) target = $region33
    $region32: #{tpu_custom_call.1} parent=1 // pred_region
      %191 = dma.done [#allocation4], 128
    $region33: #{tpu_custom_call.1} parent=1 // pred_fallthru
      _
    %192 = vsyncpa [#allocation3], 1
    %193 = vsyncpa [#allocation6], 1
    %194 = vsyncpa [#allocation4], 1

</llo_original>
